<compile_context>
chip_gen: v5e
topology: v5e:2x2
jax: 0.10.0
libtpu: 0.0.40
codegen_flags: <defaults>
</compile_context>

<pallas_src>
import jax
import jax.numpy as jnp
from jax import lax
from jax.experimental import pallas as pl
from jax.experimental.pallas import tpu as pltpu


def _round_up(x, m):
    return (x + m - 1) // m * m


# ---------------------------------------------------------------------------
# Stage 1: input gate projection, hoisted out of the serial recurrence.
#   gx = x @ W_ih[r|z|n] + b_ih     (fully parallel over time and batch)
# ---------------------------------------------------------------------------
def gru_input_proj_kernel(x_ref, wih_ref, bih_ref, gx_ref):
    # x_ref  : (rows, D)   compute dtype (bf16 by default), rows = tb * Bp
    # wih_ref: (D, 3D)     compute dtype, gates [r, z, n] concatenated
    # bih_ref: (1, 3D)     f32
    # gx_ref : (rows, 3D)  f32
    gx_ref[...] = (
        jnp.dot(x_ref[...], wih_ref[...], preferred_element_type=jnp.float32)
        + bih_ref[...]
    )


# ---------------------------------------------------------------------------
# Stage 2: masked GRU recurrence.
#   grid = (batch blocks ["parallel"], time chunks ["arbitrary"]).
#   Per grid step we stream one (tb, Bt, 3D) slab of precomputed input gates
#   (auto double-buffered DMA) and run a statically unrolled loop of tb steps.
#   The hidden state lives directly in the output block (same block index for
#   every time chunk -> VMEM-resident accumulator, written back to HBM once
#   per batch block).
# ---------------------------------------------------------------------------
def gru_recurrence_kernel(len_ref, gx_ref, whh_ref, bhh_ref, h_ref):
    # len_ref : (Bt, 1)       int32  valid length per batch row
    # gx_ref  : (tb, Bt, 3D)  f32    precomputed x@W_ih + b_ih for this chunk
    # whh_ref : (D, 3D)       compute dtype (fused recurrent weights)
    # bhh_ref : (1, 3D)       f32
    # h_ref   : (Bt, D)       f32    hidden state / final output (hid_doc)
    D = h_ref.shape[-1]
    tb = gx_ref.shape[0]
    tc = pl.program_id(1)

    @pl.when(tc == 0)
    def _init():                      # h0 = rnn.init_hid(batch) == zeros
        h_ref[...] = jnp.zeros_like(h_ref)

    lens = len_ref[...]               # (Bt, 1) int32, hoisted out of the loop
    whh = whh_ref[...]
    bhh = bhh_ref[...]
    h = h_ref[...]                    # (Bt, D) f32

    for i in range(tb):               # static unroll (short, fixed chunk)
        t = tc * tb + i
        # single fused recurrent MXU push: (Bt, D) @ (D, 3D), f32 accumulate
        gh = jnp.dot(h.astype(whh.dtype), whh,
                     preferred_element_type=jnp.float32) + bhh
        gx = gx_ref[i]                # (Bt, 3D)
        r = jax.nn.sigmoid(gx[:, 0:D] + gh[:, 0:D])
        z = jax.nn.sigmoid(gx[:, D:2 * D] + gh[:, D:2 * D])
        n = jnp.tanh(gx[:, 2 * D:3 * D] + r * gh[:, 2 * D:3 * D])
        h_new = (1.0 - z) * n + z * h
        # pack_padded_sequence semantics: freeze h once t >= length_b.
        h = jnp.where(t < lens, h_new, h)

    h_ref[...] = h


def sent_encoder_forward(inputs, mask, params, *, compute_dtype=jnp.bfloat16):
    """JAX/Pallas equivalent of the s_encoder step of EncoderDecoder.encode.

    inputs : (B, n_sent, d_hid) float  -- hid_sent from the word encoder
    mask   : (B, n_sent)        float  -- prefix validity mask (0/1)
    params : (w_ih, w_hh, b_ih, b_hh), gates [r, z, n] fused:
             w_ih, w_hh : (d_hid, 3*d_hid);  b_ih, b_hh : (1, 3*d_hid)
    returns: hid_doc (B, 1, d_hid) float32
    """
    B, T, D = inputs.shape
    w_ih, w_hh, b_ih, b_hh = params
    G = 3 * D

    # ---- tiling / padding (MXU + (8,128)-friendly) ------------------------
    Bt = min(128, _round_up(B, 8))        # batch tile (sublane multiple)
    Bp = _round_up(B, Bt)
    nb = Bp // Bt
    tb = min(_round_up(T, 8), 16)         # time chunk: recurrence unroll and
    Tp = _round_up(T, tb)                 # M-dim fattener for the projection
    nt = Tp // tb

    # ---- host-side prep ---------------------------------------------------
    # Per-row lengths replace the (T, B, 1) mask operand inside the kernels.
    lengths = jnp.sum(mask.astype(jnp.int32), axis=1)            # (B,)
    lengths = jnp.pad(lengths, (0, Bp - B))[:, None]             # (Bp, 1)

    # NOTE: the explicit x * mask multiply is dropped: with a prefix mask it
    # is exactly redundant with the in-kernel freeze (valid steps have
    # mask == 1, invalid steps never touch x), and it cost an extra HBM pass
    # over (B, T, D).  Lay out time-major and flatten for stage 1.
    x = jnp.pad(inputs.astype(compute_dtype),
                ((0, Bp - B), (0, Tp - T), (0, 0)))              # (Bp, Tp, D)
    x = jnp.transpose(x, (1, 0, 2))                              # (Tp, Bp, D)
    x2 = x.reshape(Tp * Bp, D)                                   # contiguous

    w_ih_c = w_ih.astype(compute_dtype)   # bf16 MXU operands (f32 accumulate)
    w_hh_c = w_hh.astype(compute_dtype)
    b_ih_f = b_ih.astype(jnp.float32)
    b_hh_f = b_hh.astype(jnp.float32)

    # ---- stage 1: all input projections as big, pipelined matmuls ---------
    rows = tb * Bp                        # rows per grid step (multiple of 8)
    gx2 = pl.pallas_call(
        gru_input_proj_kernel,
        grid=(nt,),
        out_shape=jax.ShapeDtypeStruct((Tp * Bp, G), jnp.float32),
        in_specs=[
            pl.BlockSpec((rows, D), lambda i: (i, 0)),     # x (streamed)
            pl.BlockSpec((D, G), lambda i: (0, 0)),        # W_ih (resident)
            pl.BlockSpec((1, G), lambda i: (0, 0)),        # b_ih (resident)
        ],
        out_specs=pl.BlockSpec((rows, G), lambda i: (i, 0)),
        compiler_params=pltpu.CompilerParams(
            dimension_semantics=("parallel",)),
    )(x2, w_ih_c, b_ih_f)
    gx = gx2.reshape(Tp, Bp, G)           # contiguous relabel (no data move)

    # ---- stage 2: serial masked recurrence over time chunks ---------------
    hid = pl.pallas_call(
        gru_recurrence_kernel,
        grid=(nb, nt),                    # (batch blocks, time chunks)
        out_shape=jax.ShapeDtypeStruct((Bp, D), jnp.float32),
        in_specs=[
            pl.BlockSpec((Bt, 1), lambda b, t: (b, 0)),        # lengths
            pl.BlockSpec((tb, Bt, G), lambda b, t: (t, b, 0)), # gx (streamed)
            pl.BlockSpec((D, G), lambda b, t: (0, 0)),         # W_hh (resident)
            pl.BlockSpec((1, G), lambda b, t: (0, 0)),         # b_hh (resident)
        ],
        out_specs=pl.BlockSpec((Bt, D), lambda b, t: (b, 0)),  # h, resident
        compiler_params=pltpu.CompilerParams(
            dimension_semantics=("parallel", "arbitrary")),
    )(lengths, gx, w_hh_c, b_hh_f)

    return hid[:B, None, :]               # Batch x 1 x d_hid  (hid_doc)


def sent_encoder_reference(inputs, mask, params, *, compute_dtype=jnp.bfloat16):
    """Pure-JAX lax.scan reference with matching numerics (bf16 matmuls)."""
    B, T, D = inputs.shape
    w_ih, w_hh, b_ih, b_hh = params
    wih = w_ih.astype(compute_dtype)
    whh = w_hh.astype(compute_dtype)

    xm = inputs.astype(jnp.float32) * mask.astype(jnp.float32)[:, :, None]
    x_tm = jnp.transpose(xm, (1, 0, 2))                       # (T, B, D)
    m_tm = jnp.transpose(mask.astype(jnp.float32), (1, 0))[:, :, None]

    def step(h, xs):
        xt, mt = xs
        gx = jnp.dot(xt.astype(compute_dtype), wih,
                     preferred_element_type=jnp.float32) + b_ih
        gh = jnp.dot(h.astype(compute_dtype), whh,
                     preferred_element_type=jnp.float32) + b_hh
        r = jax.nn.sigmoid(gx[:, :D] + gh[:, :D])
        z = jax.nn.sigmoid(gx[:, D:2 * D] + gh[:, D:2 * D])
        n = jnp.tanh(gx[:, 2 * D:] + r * gh[:, 2 * D:])
        h_new = (1.0 - z) * n + z * h
        return mt * h_new + (1.0 - mt) * h, None

    h0 = jnp.zeros((B, D), jnp.float32)
    hT, _ = lax.scan(step, h0, (x_tm, m_tm))
    return hT[:, None, :]


def init_gru_params(key, d_hid):
    """Deterministic GRU params, gates [r, z, n] concatenated on output axis."""
    k1, k2, k3, k4 = jax.random.split(key, 4)
    scale = 1.0 / (d_hid ** 0.5)
    w_ih = jax.random.uniform(k1, (d_hid, 3 * d_hid), jnp.float32, -scale, scale)
    w_hh = jax.random.uniform(k2, (d_hid, 3 * d_hid), jnp.float32, -scale, scale)
    b_ih = jax.random.uniform(k3, (1, 3 * d_hid), jnp.float32, -scale, scale)
    b_hh = jax.random.uniform(k4, (1, 3 * d_hid), jnp.float32, -scale, scale)
    return (w_ih, w_hh, b_ih, b_hh)


# TODO(synk): embeddings lookup, attention, the word/sentence decoders, beam
# search and the teacher-forcing NLLLoss loop of EncoderDecoder involve
# data-dependent Python control flow / RNG and are not translated; only the
# s_encoder GRU path (hid_doc) is implemented as Pallas kernels.

if __name__ == "__main__":
    key = jax.random.PRNGKey(0)
    k_in, k_par = jax.random.split(key)

    batch, n_sent, d_hid = 2, 8, 32
    inputs = jax.random.normal(k_in, (batch, n_sent, d_hid), jnp.float32)

    # Prefix validity mask: row 0 has 8 valid sentences, row 1 has 5.
    lengths = jnp.array([8, 5], dtype=jnp.int32)
    mask = (jnp.arange(n_sent)[None, :] < lengths[:, None]).astype(jnp.float32)

    params = init_gru_params(k_par, d_hid)

    fwd = jax.jit(sent_encoder_forward)
    hid_doc = jax.block_until_ready(fwd(inputs, mask, params))
    assert hid_doc.shape == (batch, 1, d_hid)
    assert bool(jnp.all(jnp.isfinite(hid_doc)))

    ref = sent_encoder_reference(inputs, mask, params)
    max_err = float(jnp.max(jnp.abs(hid_doc - ref)))
    assert max_err < 2e-2, f"kernel/reference mismatch: max |err| = {max_err}"

    print("KERNEL_OK")
</pallas_src>

<mosaic_0001>
module attributes {stable_mosaic.version = 11 : i64} {
  func.func @gru_input_proj_kernel(%arg0: i32, %arg1: memref<64x32xbf16, #tpu.memory_space<vmem>>, %arg2: memref<32x96xbf16, #tpu.memory_space<vmem>>, %arg3: memref<1x96xf32, #tpu.memory_space<vmem>>, %arg4: memref<64x96xf32, #tpu.memory_space<vmem>>) attributes {dimension_semantics = [#tpu.dimension_semantics<parallel>], iteration_bounds = array<i64: 1>, scalar_prefetch = 0 : i64, scratch_operands = 0 : i64, tpu.core_type = #tpu.core_type<tc>, window_params = [{transform_indices = @transform_0, window_bounds = array<i64: 64, 32>}, {pipeline_mode = #tpu.pipeline_mode<synchronous>, transform_indices = @transform_1, window_bounds = array<i64: 32, 96>}, {pipeline_mode = #tpu.pipeline_mode<synchronous>, transform_indices = @transform_2, window_bounds = array<i64: 1, 96>}, {transform_indices = @transform_3, window_bounds = array<i64: 64, 96>}]} {
    %c0 = arith.constant 0 : index
    %c0_0 = arith.constant 0 : index
    %0 = vector.load %arg1[%c0, %c0_0] : memref<64x32xbf16, #tpu.memory_space<vmem>>, vector<64x32xbf16>
    %c0_1 = arith.constant 0 : index
    %c0_2 = arith.constant 0 : index
    %1 = vector.load %arg2[%c0_1, %c0_2] : memref<32x96xbf16, #tpu.memory_space<vmem>>, vector<32x96xbf16>
    %cst = arith.constant dense<0.000000e+00> : vector<64x96xf32>
    %2 = tpu.matmul %0, %1, %cst {dimension_numbers = #tpu.dot_dimension_numbers<[1], [0], [0], [1], [0, 0, 1, 1], [], []>} : vector<64x32xbf16>, vector<32x96xbf16>, vector<64x96xf32> -> vector<64x96xf32>
    %c0_3 = arith.constant 0 : index
    %c0_4 = arith.constant 0 : index
    %3 = vector.load %arg3[%c0_3, %c0_4] : memref<1x96xf32, #tpu.memory_space<vmem>>, vector<1x96xf32>
    %4 = vector.broadcast %3 : vector<1x96xf32> to vector<64x96xf32>
    %5 = arith.addf %2, %4 : vector<64x96xf32>
    %c0_5 = arith.constant 0 : index
    %c0_6 = arith.constant 0 : index
    %6 = vector.load %arg4[%c0_5, %c0_6] : memref<64x96xf32, #tpu.memory_space<vmem>>, vector<64x96xf32>
    tpu.vector_store %arg4[%c0_5, %c0_6], %5 {strides = array<i32>} : memref<64x96xf32, #tpu.memory_space<vmem>>, vector<64x96xf32>,
    return
  }
  func.func @transform_0(%arg0: i32) -> (i32, i32) {
    %c0_i32 = arith.constant 0 : i32
    %c0_i32_0 = arith.constant 0 : i32
    return %arg0, %c0_i32 : i32, i32
  }
  func.func @transform_1(%arg0: i32) -> (i32, i32) {
    %c0_i32 = arith.constant 0 : i32
    %c0_i32_0 = arith.constant 0 : i32
    %c0_i32_1 = arith.constant 0 : i32
    return %c0_i32, %c0_i32_0 : i32, i32
  }
  func.func @transform_2(%arg0: i32) -> (i32, i32) {
    %c0_i32 = arith.constant 0 : i32
    %c0_i32_0 = arith.constant 0 : i32
    %c0_i32_1 = arith.constant 0 : i32
    return %c0_i32, %c0_i32_0 : i32, i32
  }
  func.func @transform_3(%arg0: i32) -> (i32, i32) {
    %c0_i32 = arith.constant 0 : i32
    %c0_i32_0 = arith.constant 0 : i32
    return %arg0, %c0_i32 : i32, i32
  }
}

module attributes {stable_mosaic.version = 11 : i64} {
  func.func @gru_recurrence_kernel(%arg0: i32, %arg1: i32, %arg2: memref<8x1xi32, #tpu.memory_space<vmem>>, %arg3: memref<8x8x96xf32, #tpu.memory_space<vmem>>, %arg4: memref<32x96xbf16, #tpu.memory_space<vmem>>, %arg5: memref<1x96xf32, #tpu.memory_space<vmem>>, %arg6: memref<8x32xf32, #tpu.memory_space<vmem>>) attributes {dimension_semantics = [#tpu.dimension_semantics<parallel>, #tpu.dimension_semantics<arbitrary>], iteration_bounds = array<i64: 1, 1>, scalar_prefetch = 0 : i64, scratch_operands = 0 : i64, tpu.core_type = #tpu.core_type<tc>, window_params = [{transform_indices = @transform_0, window_bounds = array<i64: 8, 1>}, {transform_indices = @transform_1, window_bounds = array<i64: 8, 8, 96>}, {pipeline_mode = #tpu.pipeline_mode<synchronous>, transform_indices = @transform_2, window_bounds = array<i64: 32, 96>}, {pipeline_mode = #tpu.pipeline_mode<synchronous>, transform_indices = @transform_3, window_bounds = array<i64: 1, 96>}, {transform_indices = @transform_4, window_bounds = array<i64: 8, 32>}]} {
    %c0_i32 = arith.constant 0 : i32
    %0 = arith.cmpi eq, %arg1, %c0_i32 : i32
    %1 = arith.extui %0 : i1 to i32
    %c0_i32_0 = arith.constant 0 : i32
    %2 = arith.cmpi ne, %1, %c0_i32_0 : i32
    scf.if %2 {
      %cst_66 = arith.constant 0.000000e+00 : f32
      %320 = vector.broadcast %cst_66 : f32 to vector<8x32xf32>
      %c0_67 = arith.constant 0 : index
      %c0_68 = arith.constant 0 : index
      %321 = vector.load %arg6[%c0_67, %c0_68] : memref<8x32xf32, #tpu.memory_space<vmem>>, vector<8x32xf32>
      tpu.vector_store %arg6[%c0_67, %c0_68], %320 {strides = array<i32>} : memref<8x32xf32, #tpu.memory_space<vmem>>, vector<8x32xf32>,
    } else {
    }
    %c0 = arith.constant 0 : index
    %c0_1 = arith.constant 0 : index
    %3 = vector.load %arg2[%c0, %c0_1] : memref<8x1xi32, #tpu.memory_space<vmem>>, vector<8x1xi32>
    %c0_2 = arith.constant 0 : index
    %c0_3 = arith.constant 0 : index
    %4 = vector.load %arg4[%c0_2, %c0_3] : memref<32x96xbf16, #tpu.memory_space<vmem>>, vector<32x96xbf16>
    %c0_4 = arith.constant 0 : index
    %c0_5 = arith.constant 0 : index
    %5 = vector.load %arg5[%c0_4, %c0_5] : memref<1x96xf32, #tpu.memory_space<vmem>>, vector<1x96xf32>
    %c0_6 = arith.constant 0 : index
    %c0_7 = arith.constant 0 : index
    %6 = vector.load %arg6[%c0_6, %c0_7] : memref<8x32xf32, #tpu.memory_space<vmem>>, vector<8x32xf32>
    %c8_i32 = arith.constant 8 : i32
    %7 = arith.muli %arg1, %c8_i32 : i32
    %c0_i32_8 = arith.constant 0 : i32
    %8 = arith.addi %7, %c0_i32_8 : i32
    %9 = arith.truncf %6 : vector<8x32xf32> to vector<8x32xbf16>
    %cst = arith.constant dense<0.000000e+00> : vector<8x96xf32>
    %10 = tpu.matmul %9, %4, %cst {dimension_numbers = #tpu.dot_dimension_numbers<[1], [0], [0], [1], [0, 0, 1, 1], [], []>} : vector<8x32xbf16>, vector<32x96xbf16>, vector<8x96xf32> -> vector<8x96xf32>
    %11 = vector.broadcast %5 : vector<1x96xf32> to vector<8x96xf32>
    %12 = arith.addf %10, %11 : vector<8x96xf32>
    %c0_9 = arith.constant 0 : index
    %c0_10 = arith.constant 0 : index
    %c0_11 = arith.constant 0 : index
    %13 = vector.load %arg3[%c0_9, %c0_10, %c0_11] : memref<8x8x96xf32, #tpu.memory_space<vmem>>, vector<1x8x96xf32>
    %14 = vector.shape_cast %13 : vector<1x8x96xf32> to vector<8x96xf32>
    %15 = vector.extract_strided_slice %14 {offsets = [0, 0], sizes = [8, 32], strides = [1, 1]} : vector<8x96xf32> to vector<8x32xf32>
    %16 = vector.extract_strided_slice %12 {offsets = [0, 0], sizes = [8, 32], strides = [1, 1]} : vector<8x96xf32> to vector<8x32xf32>
    %17 = arith.addf %15, %16 : vector<8x32xf32>
    %18 = arith.negf %17 : vector<8x32xf32>
    %19 = math.exp %18 : vector<8x32xf32>
    %cst_12 = arith.constant 1.000000e+00 : f32
    %20 = vector.broadcast %cst_12 : f32 to vector<8x32xf32>
    %21 = arith.addf %20, %19 : vector<8x32xf32>
    %22 = arith.divf %20, %21 : vector<8x32xf32>
    %23 = vector.extract_strided_slice %14 {offsets = [0, 32], sizes = [8, 32], strides = [1, 1]} : vector<8x96xf32> to vector<8x32xf32>
    %24 = vector.extract_strided_slice %12 {offsets = [0, 32], sizes = [8, 32], strides = [1, 1]} : vector<8x96xf32> to vector<8x32xf32>
    %25 = arith.addf %23, %24 : vector<8x32xf32>
    %26 = arith.negf %25 : vector<8x32xf32>
    %27 = math.exp %26 : vector<8x32xf32>
    %cst_13 = arith.constant 1.000000e+00 : f32
    %28 = vector.broadcast %cst_13 : f32 to vector<8x32xf32>
    %29 = arith.addf %28, %27 : vector<8x32xf32>
    %30 = arith.divf %28, %29 : vector<8x32xf32>
    %31 = vector.extract_strided_slice %14 {offsets = [0, 64], sizes = [8, 32], strides = [1, 1]} : vector<8x96xf32> to vector<8x32xf32>
    %32 = vector.extract_strided_slice %12 {offsets = [0, 64], sizes = [8, 32], strides = [1, 1]} : vector<8x96xf32> to vector<8x32xf32>
    %33 = arith.mulf %22, %32 : vector<8x32xf32>
    %34 = arith.addf %31, %33 : vector<8x32xf32>
    %35 = math.tanh %34 : vector<8x32xf32>
    %cst_14 = arith.constant 1.000000e+00 : f32
    %36 = vector.broadcast %cst_14 : f32 to vector<8x32xf32>
    %37 = arith.subf %36, %30 : vector<8x32xf32>
    %38 = arith.mulf %37, %35 : vector<8x32xf32>
    %39 = arith.mulf %30, %6 : vector<8x32xf32>
    %40 = arith.addf %38, %39 : vector<8x32xf32>
    %41 = vector.broadcast %8 : i32 to vector<8x1xi32>
    %42 = arith.cmpi slt, %41, %3 : vector<8x1xi32>
    %43 = vector.shape_cast %42 : vector<8x1xi1> to vector<8x1xi1>
    %44 = vector.broadcast %43 : vector<8x1xi1> to vector<8x32xi1>
    %45 = arith.select %44, %40, %6 : vector<8x32xi1>, vector<8x32xf32>
    %c8_i32_15 = arith.constant 8 : i32
    %46 = arith.muli %arg1, %c8_i32_15 : i32
    %c1_i32 = arith.constant 1 : i32
    %47 = arith.addi %46, %c1_i32 : i32
    %48 = arith.truncf %45 : vector<8x32xf32> to vector<8x32xbf16>
    %cst_16 = arith.constant dense<0.000000e+00> : vector<8x96xf32>
    %49 = tpu.matmul %48, %4, %cst_16 {dimension_numbers = #tpu.dot_dimension_numbers<[1], [0], [0], [1], [0, 0, 1, 1], [], []>} : vector<8x32xbf16>, vector<32x96xbf16>, vector<8x96xf32> -> vector<8x96xf32>
    %50 = vector.broadcast %5 : vector<1x96xf32> to vector<8x96xf32>
    %51 = arith.addf %49, %50 : vector<8x96xf32>
    %c1 = arith.constant 1 : index
    %c0_17 = arith.constant 0 : index
    %c0_18 = arith.constant 0 : index
    %52 = vector.load %arg3[%c1, %c0_17, %c0_18] : memref<8x8x96xf32, #tpu.memory_space<vmem>>, vector<1x8x96xf32>
    %53 = vector.shape_cast %52 : vector<1x8x96xf32> to vector<8x96xf32>
    %54 = vector.extract_strided_slice %53 {offsets = [0, 0], sizes = [8, 32], strides = [1, 1]} : vector<8x96xf32> to vector<8x32xf32>
    %55 = vector.extract_strided_slice %51 {offsets = [0, 0], sizes = [8, 32], strides = [1, 1]} : vector<8x96xf32> to vector<8x32xf32>
    %56 = arith.addf %54, %55 : vector<8x32xf32>
    %57 = arith.negf %56 : vector<8x32xf32>
    %58 = math.exp %57 : vector<8x32xf32>
    %cst_19 = arith.constant 1.000000e+00 : f32
    %59 = vector.broadcast %cst_19 : f32 to vector<8x32xf32>
    %60 = arith.addf %59, %58 : vector<8x32xf32>
    %61 = arith.divf %59, %60 : vector<8x32xf32>
    %62 = vector.extract_strided_slice %53 {offsets = [0, 32], sizes = [8, 32], strides = [1, 1]} : vector<8x96xf32> to vector<8x32xf32>
    %63 = vector.extract_strided_slice %51 {offsets = [0, 32], sizes = [8, 32], strides = [1, 1]} : vector<8x96xf32> to vector<8x32xf32>
    %64 = arith.addf %62, %63 : vector<8x32xf32>
    %65 = arith.negf %64 : vector<8x32xf32>
    %66 = math.exp %65 : vector<8x32xf32>
    %cst_20 = arith.constant 1.000000e+00 : f32
    %67 = vector.broadcast %cst_20 : f32 to vector<8x32xf32>
    %68 = arith.addf %67, %66 : vector<8x32xf32>
    %69 = arith.divf %67, %68 : vector<8x32xf32>
    %70 = vector.extract_strided_slice %53 {offsets = [0, 64], sizes = [8, 32], strides = [1, 1]} : vector<8x96xf32> to vector<8x32xf32>
    %71 = vector.extract_strided_slice %51 {offsets = [0, 64], sizes = [8, 32], strides = [1, 1]} : vector<8x96xf32> to vector<8x32xf32>
    %72 = arith.mulf %61, %71 : vector<8x32xf32>
    %73 = arith.addf %70, %72 : vector<8x32xf32>
    %74 = math.tanh %73 : vector<8x32xf32>
    %cst_21 = arith.constant 1.000000e+00 : f32
    %75 = vector.broadcast %cst_21 : f32 to vector<8x32xf32>
    %76 = arith.subf %75, %69 : vector<8x32xf32>
    %77 = arith.mulf %76, %74 : vector<8x32xf32>
    %78 = arith.mulf %69, %45 : vector<8x32xf32>
    %79 = arith.addf %77, %78 : vector<8x32xf32>
    %80 = vector.broadcast %47 : i32 to vector<8x1xi32>
    %81 = arith.cmpi slt, %80, %3 : vector<8x1xi32>
    %82 = vector.shape_cast %81 : vector<8x1xi1> to vector<8x1xi1>
    %83 = vector.broadcast %82 : vector<8x1xi1> to vector<8x32xi1>
    %84 = arith.select %83, %79, %45 : vector<8x32xi1>, vector<8x32xf32>
    %c8_i32_22 = arith.constant 8 : i32
    %85 = arith.muli %arg1, %c8_i32_22 : i32
    %c2_i32 = arith.constant 2 : i32
    %86 = arith.addi %85, %c2_i32 : i32
    %87 = arith.truncf %84 : vector<8x32xf32> to vector<8x32xbf16>
    %cst_23 = arith.constant dense<0.000000e+00> : vector<8x96xf32>
    %88 = tpu.matmul %87, %4, %cst_23 {dimension_numbers = #tpu.dot_dimension_numbers<[1], [0], [0], [1], [0, 0, 1, 1], [], []>} : vector<8x32xbf16>, vector<32x96xbf16>, vector<8x96xf32> -> vector<8x96xf32>
    %89 = vector.broadcast %5 : vector<1x96xf32> to vector<8x96xf32>
    %90 = arith.addf %88, %89 : vector<8x96xf32>
    %c2 = arith.constant 2 : index
    %c0_24 = arith.constant 0 : index
    %c0_25 = arith.constant 0 : index
    %91 = vector.load %arg3[%c2, %c0_24, %c0_25] : memref<8x8x96xf32, #tpu.memory_space<vmem>>, vector<1x8x96xf32>
    %92 = vector.shape_cast %91 : vector<1x8x96xf32> to vector<8x96xf32>
    %93 = vector.extract_strided_slice %92 {offsets = [0, 0], sizes = [8, 32], strides = [1, 1]} : vector<8x96xf32> to vector<8x32xf32>
    %94 = vector.extract_strided_slice %90 {offsets = [0, 0], sizes = [8, 32], strides = [1, 1]} : vector<8x96xf32> to vector<8x32xf32>
    %95 = arith.addf %93, %94 : vector<8x32xf32>
    %96 = arith.negf %95 : vector<8x32xf32>
    %97 = math.exp %96 : vector<8x32xf32>
    %cst_26 = arith.constant 1.000000e+00 : f32
    %98 = vector.broadcast %cst_26 : f32 to vector<8x32xf32>
    %99 = arith.addf %98, %97 : vector<8x32xf32>
    %100 = arith.divf %98, %99 : vector<8x32xf32>
    %101 = vector.extract_strided_slice %92 {offsets = [0, 32], sizes = [8, 32], strides = [1, 1]} : vector<8x96xf32> to vector<8x32xf32>
    %102 = vector.extract_strided_slice %90 {offsets = [0, 32], sizes = [8, 32], strides = [1, 1]} : vector<8x96xf32> to vector<8x32xf32>
    %103 = arith.addf %101, %102 : vector<8x32xf32>
    %104 = arith.negf %103 : vector<8x32xf32>
    %105 = math.exp %104 : vector<8x32xf32>
    %cst_27 = arith.constant 1.000000e+00 : f32
    %106 = vector.broadcast %cst_27 : f32 to vector<8x32xf32>
    %107 = arith.addf %106, %105 : vector<8x32xf32>
    %108 = arith.divf %106, %107 : vector<8x32xf32>
    %109 = vector.extract_strided_slice %92 {offsets = [0, 64], sizes = [8, 32], strides = [1, 1]} : vector<8x96xf32> to vector<8x32xf32>
    %110 = vector.extract_strided_slice %90 {offsets = [0, 64], sizes = [8, 32], strides = [1, 1]} : vector<8x96xf32> to vector<8x32xf32>
    %111 = arith.mulf %100, %110 : vector<8x32xf32>
    %112 = arith.addf %109, %111 : vector<8x32xf32>
    %113 = math.tanh %112 : vector<8x32xf32>
    %cst_28 = arith.constant 1.000000e+00 : f32
    %114 = vector.broadcast %cst_28 : f32 to vector<8x32xf32>
    %115 = arith.subf %114, %108 : vector<8x32xf32>
    %116 = arith.mulf %115, %113 : vector<8x32xf32>
    %117 = arith.mulf %108, %84 : vector<8x32xf32>
    %118 = arith.addf %116, %117 : vector<8x32xf32>
    %119 = vector.broadcast %86 : i32 to vector<8x1xi32>
    %120 = arith.cmpi slt, %119, %3 : vector<8x1xi32>
    %121 = vector.shape_cast %120 : vector<8x1xi1> to vector<8x1xi1>
    %122 = vector.broadcast %121 : vector<8x1xi1> to vector<8x32xi1>
    %123 = arith.select %122, %118, %84 : vector<8x32xi1>, vector<8x32xf32>
    %c8_i32_29 = arith.constant 8 : i32
    %124 = arith.muli %arg1, %c8_i32_29 : i32
    %c3_i32 = arith.constant 3 : i32
    %125 = arith.addi %124, %c3_i32 : i32
    %126 = arith.truncf %123 : vector<8x32xf32> to vector<8x32xbf16>
    %cst_30 = arith.constant dense<0.000000e+00> : vector<8x96xf32>
    %127 = tpu.matmul %126, %4, %cst_30 {dimension_numbers = #tpu.dot_dimension_numbers<[1], [0], [0], [1], [0, 0, 1, 1], [], []>} : vector<8x32xbf16>, vector<32x96xbf16>, vector<8x96xf32> -> vector<8x96xf32>
    %128 = vector.broadcast %5 : vector<1x96xf32> to vector<8x96xf32>
    %129 = arith.addf %127, %128 : vector<8x96xf32>
    %c3 = arith.constant 3 : index
    %c0_31 = arith.constant 0 : index
    %c0_32 = arith.constant 0 : index
    %130 = vector.load %arg3[%c3, %c0_31, %c0_32] : memref<8x8x96xf32, #tpu.memory_space<vmem>>, vector<1x8x96xf32>
    %131 = vector.shape_cast %130 : vector<1x8x96xf32> to vector<8x96xf32>
    %132 = vector.extract_strided_slice %131 {offsets = [0, 0], sizes = [8, 32], strides = [1, 1]} : vector<8x96xf32> to vector<8x32xf32>
    %133 = vector.extract_strided_slice %129 {offsets = [0, 0], sizes = [8, 32], strides = [1, 1]} : vector<8x96xf32> to vector<8x32xf32>
    %134 = arith.addf %132, %133 : vector<8x32xf32>
    %135 = arith.negf %134 : vector<8x32xf32>
    %136 = math.exp %135 : vector<8x32xf32>
    %cst_33 = arith.constant 1.000000e+00 : f32
    %137 = vector.broadcast %cst_33 : f32 to vector<8x32xf32>
    %138 = arith.addf %137, %136 : vector<8x32xf32>
    %139 = arith.divf %137, %138 : vector<8x32xf32>
    %140 = vector.extract_strided_slice %131 {offsets = [0, 32], sizes = [8, 32], strides = [1, 1]} : vector<8x96xf32> to vector<8x32xf32>
    %141 = vector.extract_strided_slice %129 {offsets = [0, 32], sizes = [8, 32], strides = [1, 1]} : vector<8x96xf32> to vector<8x32xf32>
    %142 = arith.addf %140, %141 : vector<8x32xf32>
    %143 = arith.negf %142 : vector<8x32xf32>
    %144 = math.exp %143 : vector<8x32xf32>
    %cst_34 = arith.constant 1.000000e+00 : f32
    %145 = vector.broadcast %cst_34 : f32 to vector<8x32xf32>
    %146 = arith.addf %145, %144 : vector<8x32xf32>
    %147 = arith.divf %145, %146 : vector<8x32xf32>
    %148 = vector.extract_strided_slice %131 {offsets = [0, 64], sizes = [8, 32], strides = [1, 1]} : vector<8x96xf32> to vector<8x32xf32>
    %149 = vector.extract_strided_slice %129 {offsets = [0, 64], sizes = [8, 32], strides = [1, 1]} : vector<8x96xf32> to vector<8x32xf32>
    %150 = arith.mulf %139, %149 : vector<8x32xf32>
    %151 = arith.addf %148, %150 : vector<8x32xf32>
    %152 = math.tanh %151 : vector<8x32xf32>
    %cst_35 = arith.constant 1.000000e+00 : f32
    %153 = vector.broadcast %cst_35 : f32 to vector<8x32xf32>
    %154 = arith.subf %153, %147 : vector<8x32xf32>
    %155 = arith.mulf %154, %152 : vector<8x32xf32>
    %156 = arith.mulf %147, %123 : vector<8x32xf32>
    %157 = arith.addf %155, %156 : vector<8x32xf32>
    %158 = vector.broadcast %125 : i32 to vector<8x1xi32>
    %159 = arith.cmpi slt, %158, %3 : vector<8x1xi32>
    %160 = vector.shape_cast %159 : vector<8x1xi1> to vector<8x1xi1>
    %161 = vector.broadcast %160 : vector<8x1xi1> to vector<8x32xi1>
    %162 = arith.select %161, %157, %123 : vector<8x32xi1>, vector<8x32xf32>
    %c8_i32_36 = arith.constant 8 : i32
    %163 = arith.muli %arg1, %c8_i32_36 : i32
    %c4_i32 = arith.constant 4 : i32
    %164 = arith.addi %163, %c4_i32 : i32
    %165 = arith.truncf %162 : vector<8x32xf32> to vector<8x32xbf16>
    %cst_37 = arith.constant dense<0.000000e+00> : vector<8x96xf32>
    %166 = tpu.matmul %165, %4, %cst_37 {dimension_numbers = #tpu.dot_dimension_numbers<[1], [0], [0], [1], [0, 0, 1, 1], [], []>} : vector<8x32xbf16>, vector<32x96xbf16>, vector<8x96xf32> -> vector<8x96xf32>
    %167 = vector.broadcast %5 : vector<1x96xf32> to vector<8x96xf32>
    %168 = arith.addf %166, %167 : vector<8x96xf32>
    %c4 = arith.constant 4 : index
    %c0_38 = arith.constant 0 : index
    %c0_39 = arith.constant 0 : index
    %169 = vector.load %arg3[%c4, %c0_38, %c0_39] : memref<8x8x96xf32, #tpu.memory_space<vmem>>, vector<1x8x96xf32>
    %170 = vector.shape_cast %169 : vector<1x8x96xf32> to vector<8x96xf32>
    %171 = vector.extract_strided_slice %170 {offsets = [0, 0], sizes = [8, 32], strides = [1, 1]} : vector<8x96xf32> to vector<8x32xf32>
    %172 = vector.extract_strided_slice %168 {offsets = [0, 0], sizes = [8, 32], strides = [1, 1]} : vector<8x96xf32> to vector<8x32xf32>
    %173 = arith.addf %171, %172 : vector<8x32xf32>
    %174 = arith.negf %173 : vector<8x32xf32>
    %175 = math.exp %174 : vector<8x32xf32>
    %cst_40 = arith.constant 1.000000e+00 : f32
    %176 = vector.broadcast %cst_40 : f32 to vector<8x32xf32>
    %177 = arith.addf %176, %175 : vector<8x32xf32>
    %178 = arith.divf %176, %177 : vector<8x32xf32>
    %179 = vector.extract_strided_slice %170 {offsets = [0, 32], sizes = [8, 32], strides = [1, 1]} : vector<8x96xf32> to vector<8x32xf32>
    %180 = vector.extract_strided_slice %168 {offsets = [0, 32], sizes = [8, 32], strides = [1, 1]} : vector<8x96xf32> to vector<8x32xf32>
    %181 = arith.addf %179, %180 : vector<8x32xf32>
    %182 = arith.negf %181 : vector<8x32xf32>
    %183 = math.exp %182 : vector<8x32xf32>
    %cst_41 = arith.constant 1.000000e+00 : f32
    %184 = vector.broadcast %cst_41 : f32 to vector<8x32xf32>
    %185 = arith.addf %184, %183 : vector<8x32xf32>
    %186 = arith.divf %184, %185 : vector<8x32xf32>
    %187 = vector.extract_strided_slice %170 {offsets = [0, 64], sizes = [8, 32], strides = [1, 1]} : vector<8x96xf32> to vector<8x32xf32>
    %188 = vector.extract_strided_slice %168 {offsets = [0, 64], sizes = [8, 32], strides = [1, 1]} : vector<8x96xf32> to vector<8x32xf32>
    %189 = arith.mulf %178, %188 : vector<8x32xf32>
    %190 = arith.addf %187, %189 : vector<8x32xf32>
    %191 = math.tanh %190 : vector<8x32xf32>
    %cst_42 = arith.constant 1.000000e+00 : f32
    %192 = vector.broadcast %cst_42 : f32 to vector<8x32xf32>
    %193 = arith.subf %192, %186 : vector<8x32xf32>
    %194 = arith.mulf %193, %191 : vector<8x32xf32>
    %195 = arith.mulf %186, %162 : vector<8x32xf32>
    %196 = arith.addf %194, %195 : vector<8x32xf32>
    %197 = vector.broadcast %164 : i32 to vector<8x1xi32>
    %198 = arith.cmpi slt, %197, %3 : vector<8x1xi32>
    %199 = vector.shape_cast %198 : vector<8x1xi1> to vector<8x1xi1>
    %200 = vector.broadcast %199 : vector<8x1xi1> to vector<8x32xi1>
    %201 = arith.select %200, %196, %162 : vector<8x32xi1>, vector<8x32xf32>
    %c8_i32_43 = arith.constant 8 : i32
    %202 = arith.muli %arg1, %c8_i32_43 : i32
    %c5_i32 = arith.constant 5 : i32
    %203 = arith.addi %202, %c5_i32 : i32
    %204 = arith.truncf %201 : vector<8x32xf32> to vector<8x32xbf16>
    %cst_44 = arith.constant dense<0.000000e+00> : vector<8x96xf32>
    %205 = tpu.matmul %204, %4, %cst_44 {dimension_numbers = #tpu.dot_dimension_numbers<[1], [0], [0], [1], [0, 0, 1, 1], [], []>} : vector<8x32xbf16>, vector<32x96xbf16>, vector<8x96xf32> -> vector<8x96xf32>
    %206 = vector.broadcast %5 : vector<1x96xf32> to vector<8x96xf32>
    %207 = arith.addf %205, %206 : vector<8x96xf32>
    %c5 = arith.constant 5 : index
    %c0_45 = arith.constant 0 : index
    %c0_46 = arith.constant 0 : index
    %208 = vector.load %arg3[%c5, %c0_45, %c0_46] : memref<8x8x96xf32, #tpu.memory_space<vmem>>, vector<1x8x96xf32>
    %209 = vector.shape_cast %208 : vector<1x8x96xf32> to vector<8x96xf32>
    %210 = vector.extract_strided_slice %209 {offsets = [0, 0], sizes = [8, 32], strides = [1, 1]} : vector<8x96xf32> to vector<8x32xf32>
    %211 = vector.extract_strided_slice %207 {offsets = [0, 0], sizes = [8, 32], strides = [1, 1]} : vector<8x96xf32> to vector<8x32xf32>
    %212 = arith.addf %210, %211 : vector<8x32xf32>
    %213 = arith.negf %212 : vector<8x32xf32>
    %214 = math.exp %213 : vector<8x32xf32>
    %cst_47 = arith.constant 1.000000e+00 : f32
    %215 = vector.broadcast %cst_47 : f32 to vector<8x32xf32>
    %216 = arith.addf %215, %214 : vector<8x32xf32>
    %217 = arith.divf %215, %216 : vector<8x32xf32>
    %218 = vector.extract_strided_slice %209 {offsets = [0, 32], sizes = [8, 32], strides = [1, 1]} : vector<8x96xf32> to vector<8x32xf32>
    %219 = vector.extract_strided_slice %207 {offsets = [0, 32], sizes = [8, 32], strides = [1, 1]} : vector<8x96xf32> to vector<8x32xf32>
    %220 = arith.addf %218, %219 : vector<8x32xf32>
    %221 = arith.negf %220 : vector<8x32xf32>
    %222 = math.exp %221 : vector<8x32xf32>
    %cst_48 = arith.constant 1.000000e+00 : f32
    %223 = vector.broadcast %cst_48 : f32 to vector<8x32xf32>
    %224 = arith.addf %223, %222 : vector<8x32xf32>
    %225 = arith.divf %223, %224 : vector<8x32xf32>
    %226 = vector.extract_strided_slice %209 {offsets = [0, 64], sizes = [8, 32], strides = [1, 1]} : vector<8x96xf32> to vector<8x32xf32>
    %227 = vector.extract_strided_slice %207 {offsets = [0, 64], sizes = [8, 32], strides = [1, 1]} : vector<8x96xf32> to vector<8x32xf32>
    %228 = arith.mulf %217, %227 : vector<8x32xf32>
    %229 = arith.addf %226, %228 : vector<8x32xf32>
    %230 = math.tanh %229 : vector<8x32xf32>
    %cst_49 = arith.constant 1.000000e+00 : f32
    %231 = vector.broadcast %cst_49 : f32 to vector<8x32xf32>
    %232 = arith.subf %231, %225 : vector<8x32xf32>
    %233 = arith.mulf %232, %230 : vector<8x32xf32>
    %234 = arith.mulf %225, %201 : vector<8x32xf32>
    %235 = arith.addf %233, %234 : vector<8x32xf32>
    %236 = vector.broadcast %203 : i32 to vector<8x1xi32>
    %237 = arith.cmpi slt, %236, %3 : vector<8x1xi32>
    %238 = vector.shape_cast %237 : vector<8x1xi1> to vector<8x1xi1>
    %239 = vector.broadcast %238 : vector<8x1xi1> to vector<8x32xi1>
    %240 = arith.select %239, %235, %201 : vector<8x32xi1>, vector<8x32xf32>
    %c8_i32_50 = arith.constant 8 : i32
    %241 = arith.muli %arg1, %c8_i32_50 : i32
    %c6_i32 = arith.constant 6 : i32
    %242 = arith.addi %241, %c6_i32 : i32
    %243 = arith.truncf %240 : vector<8x32xf32> to vector<8x32xbf16>
    %cst_51 = arith.constant dense<0.000000e+00> : vector<8x96xf32>
    %244 = tpu.matmul %243, %4, %cst_51 {dimension_numbers = #tpu.dot_dimension_numbers<[1], [0], [0], [1], [0, 0, 1, 1], [], []>} : vector<8x32xbf16>, vector<32x96xbf16>, vector<8x96xf32> -> vector<8x96xf32>
    %245 = vector.broadcast %5 : vector<1x96xf32> to vector<8x96xf32>
    %246 = arith.addf %244, %245 : vector<8x96xf32>
    %c6 = arith.constant 6 : index
    %c0_52 = arith.constant 0 : index
    %c0_53 = arith.constant 0 : index
    %247 = vector.load %arg3[%c6, %c0_52, %c0_53] : memref<8x8x96xf32, #tpu.memory_space<vmem>>, vector<1x8x96xf32>
    %248 = vector.shape_cast %247 : vector<1x8x96xf32> to vector<8x96xf32>
    %249 = vector.extract_strided_slice %248 {offsets = [0, 0], sizes = [8, 32], strides = [1, 1]} : vector<8x96xf32> to vector<8x32xf32>
    %250 = vector.extract_strided_slice %246 {offsets = [0, 0], sizes = [8, 32], strides = [1, 1]} : vector<8x96xf32> to vector<8x32xf32>
    %251 = arith.addf %249, %250 : vector<8x32xf32>
    %252 = arith.negf %251 : vector<8x32xf32>
    %253 = math.exp %252 : vector<8x32xf32>
    %cst_54 = arith.constant 1.000000e+00 : f32
    %254 = vector.broadcast %cst_54 : f32 to vector<8x32xf32>
    %255 = arith.addf %254, %253 : vector<8x32xf32>
    %256 = arith.divf %254, %255 : vector<8x32xf32>
    %257 = vector.extract_strided_slice %248 {offsets = [0, 32], sizes = [8, 32], strides = [1, 1]} : vector<8x96xf32> to vector<8x32xf32>
    %258 = vector.extract_strided_slice %246 {offsets = [0, 32], sizes = [8, 32], strides = [1, 1]} : vector<8x96xf32> to vector<8x32xf32>
    %259 = arith.addf %257, %258 : vector<8x32xf32>
    %260 = arith.negf %259 : vector<8x32xf32>
    %261 = math.exp %260 : vector<8x32xf32>
    %cst_55 = arith.constant 1.000000e+00 : f32
    %262 = vector.broadcast %cst_55 : f32 to vector<8x32xf32>
    %263 = arith.addf %262, %261 : vector<8x32xf32>
    %264 = arith.divf %262, %263 : vector<8x32xf32>
    %265 = vector.extract_strided_slice %248 {offsets = [0, 64], sizes = [8, 32], strides = [1, 1]} : vector<8x96xf32> to vector<8x32xf32>
    %266 = vector.extract_strided_slice %246 {offsets = [0, 64], sizes = [8, 32], strides = [1, 1]} : vector<8x96xf32> to vector<8x32xf32>
    %267 = arith.mulf %256, %266 : vector<8x32xf32>
    %268 = arith.addf %265, %267 : vector<8x32xf32>
    %269 = math.tanh %268 : vector<8x32xf32>
    %cst_56 = arith.constant 1.000000e+00 : f32
    %270 = vector.broadcast %cst_56 : f32 to vector<8x32xf32>
    %271 = arith.subf %270, %264 : vector<8x32xf32>
    %272 = arith.mulf %271, %269 : vector<8x32xf32>
    %273 = arith.mulf %264, %240 : vector<8x32xf32>
    %274 = arith.addf %272, %273 : vector<8x32xf32>
    %275 = vector.broadcast %242 : i32 to vector<8x1xi32>
    %276 = arith.cmpi slt, %275, %3 : vector<8x1xi32>
    %277 = vector.shape_cast %276 : vector<8x1xi1> to vector<8x1xi1>
    %278 = vector.broadcast %277 : vector<8x1xi1> to vector<8x32xi1>
    %279 = arith.select %278, %274, %240 : vector<8x32xi1>, vector<8x32xf32>
    %c8_i32_57 = arith.constant 8 : i32
    %280 = arith.muli %arg1, %c8_i32_57 : i32
    %c7_i32 = arith.constant 7 : i32
    %281 = arith.addi %280, %c7_i32 : i32
    %282 = arith.truncf %279 : vector<8x32xf32> to vector<8x32xbf16>
    %cst_58 = arith.constant dense<0.000000e+00> : vector<8x96xf32>
    %283 = tpu.matmul %282, %4, %cst_58 {dimension_numbers = #tpu.dot_dimension_numbers<[1], [0], [0], [1], [0, 0, 1, 1], [], []>} : vector<8x32xbf16>, vector<32x96xbf16>, vector<8x96xf32> -> vector<8x96xf32>
    %284 = vector.broadcast %5 : vector<1x96xf32> to vector<8x96xf32>
    %285 = arith.addf %283, %284 : vector<8x96xf32>
    %c7 = arith.constant 7 : index
    %c0_59 = arith.constant 0 : index
    %c0_60 = arith.constant 0 : index
    %286 = vector.load %arg3[%c7, %c0_59, %c0_60] : memref<8x8x96xf32, #tpu.memory_space<vmem>>, vector<1x8x96xf32>
    %287 = vector.shape_cast %286 : vector<1x8x96xf32> to vector<8x96xf32>
    %288 = vector.extract_strided_slice %287 {offsets = [0, 0], sizes = [8, 32], strides = [1, 1]} : vector<8x96xf32> to vector<8x32xf32>
    %289 = vector.extract_strided_slice %285 {offsets = [0, 0], sizes = [8, 32], strides = [1, 1]} : vector<8x96xf32> to vector<8x32xf32>
    %290 = arith.addf %288, %289 : vector<8x32xf32>
    %291 = arith.negf %290 : vector<8x32xf32>
    %292 = math.exp %291 : vector<8x32xf32>
    %cst_61 = arith.constant 1.000000e+00 : f32
    %293 = vector.broadcast %cst_61 : f32 to vector<8x32xf32>
    %294 = arith.addf %293, %292 : vector<8x32xf32>
    %295 = arith.divf %293, %294 : vector<8x32xf32>
    %296 = vector.extract_strided_slice %287 {offsets = [0, 32], sizes = [8, 32], strides = [1, 1]} : vector<8x96xf32> to vector<8x32xf32>
    %297 = vector.extract_strided_slice %285 {offsets = [0, 32], sizes = [8, 32], strides = [1, 1]} : vector<8x96xf32> to vector<8x32xf32>
    %298 = arith.addf %296, %297 : vector<8x32xf32>
    %299 = arith.negf %298 : vector<8x32xf32>
    %300 = math.exp %299 : vector<8x32xf32>
    %cst_62 = arith.constant 1.000000e+00 : f32
    %301 = vector.broadcast %cst_62 : f32 to vector<8x32xf32>
    %302 = arith.addf %301, %300 : vector<8x32xf32>
    %303 = arith.divf %301, %302 : vector<8x32xf32>
    %304 = vector.extract_strided_slice %287 {offsets = [0, 64], sizes = [8, 32], strides = [1, 1]} : vector<8x96xf32> to vector<8x32xf32>
    %305 = vector.extract_strided_slice %285 {offsets = [0, 64], sizes = [8, 32], strides = [1, 1]} : vector<8x96xf32> to vector<8x32xf32>
    %306 = arith.mulf %295, %305 : vector<8x32xf32>
    %307 = arith.addf %304, %306 : vector<8x32xf32>
    %308 = math.tanh %307 : vector<8x32xf32>
    %cst_63 = arith.constant 1.000000e+00 : f32
    %309 = vector.broadcast %cst_63 : f32 to vector<8x32xf32>
    %310 = arith.subf %309, %303 : vector<8x32xf32>
    %311 = arith.mulf %310, %308 : vector<8x32xf32>
    %312 = arith.mulf %303, %279 : vector<8x32xf32>
    %313 = arith.addf %311, %312 : vector<8x32xf32>
    %314 = vector.broadcast %281 : i32 to vector<8x1xi32>
    %315 = arith.cmpi slt, %314, %3 : vector<8x1xi32>
    %316 = vector.shape_cast %315 : vector<8x1xi1> to vector<8x1xi1>
    %317 = vector.broadcast %316 : vector<8x1xi1> to vector<8x32xi1>
    %318 = arith.select %317, %313, %279 : vector<8x32xi1>, vector<8x32xf32>
    %c0_64 = arith.constant 0 : index
    %c0_65 = arith.constant 0 : index
    %319 = vector.load %arg6[%c0_64, %c0_65] : memref<8x32xf32, #tpu.memory_space<vmem>>, vector<8x32xf32>
    tpu.vector_store %arg6[%c0_64, %c0_65], %318 {strides = array<i32>} : memref<8x32xf32, #tpu.memory_space<vmem>>, vector<8x32xf32>,
    return
  }
  func.func @transform_0(%arg0: i32, %arg1: i32) -> (i32, i32) {
    %c0_i32 = arith.constant 0 : i32
    %c0_i32_0 = arith.constant 0 : i32
    return %arg0, %c0_i32 : i32, i32
  }
  func.func @transform_1(%arg0: i32, %arg1: i32) -> (i32, i32, i32) {
    %c0_i32 = arith.constant 0 : i32
    %c0_i32_0 = arith.constant 0 : i32
    return %arg1, %arg0, %c0_i32 : i32, i32, i32
  }
  func.func @transform_2(%arg0: i32, %arg1: i32) -> (i32, i32) {
    %c0_i32 = arith.constant 0 : i32
    %c0_i32_0 = arith.constant 0 : i32
    %c0_i32_1 = arith.constant 0 : i32
    return %c0_i32, %c0_i32_0 : i32, i32
  }
  func.func @transform_3(%arg0: i32, %arg1: i32) -> (i32, i32) {
    %c0_i32 = arith.constant 0 : i32
    %c0_i32_0 = arith.constant 0 : i32
    %c0_i32_1 = arith.constant 0 : i32
    return %c0_i32, %c0_i32_0 : i32, i32
  }
  func.func @transform_4(%arg0: i32, %arg1: i32) -> (i32, i32) {
    %c0_i32 = arith.constant 0 : i32
    %c0_i32_0 = arith.constant 0 : i32
    return %arg0, %c0_i32 : i32, i32
  }
}

</mosaic_0001>

<llo_original>
// kernel: sent_encoder_forward.2
$region0: #{sent_encoder_forward.2}
  #allocation0 [shape = 'u32[]', space=smem, size = 0x4, offset = 0x4, fixed_abs, tag = 'smem constant byte address 0x4 - core index']
  #allocation1 [shape = 'u32[72,128]{1,0:T(1,128)}', space=vmem, size = 0x9000, scoped, tag = 'internal scratch']
  %s0 = inlined_call_operand.vmem [shape: bf16[64,32], index: 0, kind: input, shape index: {}]
  %s1 = inlined_call_operand.vmem [shape: bf16[32,96], index: 1, kind: input, shape index: {}]
  %s2 = inlined_call_operand.vmem [shape: f32[1,96], index: 2, kind: input, shape index: {}]
  %s3 = inlined_call_operand.vmem [shape: f32[64,96], index: 3, kind: output, shape index: {}]
  %s4 = sld [smem:[#allocation0]]
  $region22: #{sent_encoder_forward.2} parent=0
    _
  %s6 = ssub.s32 1, %s4
  %s7 = scalar_select 0, %s6, %s4
  // Predicated region
  $region2: #{sent_encoder_forward.2} parent=0 // pred_check
    _
  $region3: #{sent_encoder_forward.2} parent=0 // pred_check_branch
    %9 = sbr.rel (0) target = $region5
  $region4: #{sent_encoder_forward.2} parent=0 // pred_region
    _
  $region5: #{sent_encoder_forward.2} parent=0 // pred_fallthru
    _
  // Predicated region
  $region6: #{sent_encoder_forward.2} parent=0 // pred_check
    _
  $region7: #{sent_encoder_forward.2} parent=0 // pred_check_branch
    %11 = sbr.rel (0) target = $region9
  $region8: #{sent_encoder_forward.2} parent=0 // pred_region
    _
  $region9: #{sent_encoder_forward.2} parent=0 // pred_fallthru
    _
  // Predicated region
  $region10: #{sent_encoder_forward.2} parent=0 // pred_check
    _
  $region11: #{sent_encoder_forward.2} parent=0 // pred_check_branch
    %13 = sbr.rel (0) target = $region13
  $region12: #{sent_encoder_forward.2} parent=0 // pred_region
    _
  $region13: #{sent_encoder_forward.2} parent=0 // pred_fallthru
    _
  %v15 = vld [vmem:[%s0] sm:$0xf]
  %v16 = vld [vmem:[%s0 + $0x4] sm:$0xf]
  %v17 = vld [vmem:[%s0 + $0x8] sm:$0xf]
  %v18 = vld [vmem:[%s0 + $0xc] sm:$0xf]
  %v19 = vld [vmem:[%s0 + $0x10] sm:$0xf]
  %v20 = vld [vmem:[%s0 + $0x14] sm:$0xf]
  %v21 = vld [vmem:[%s0 + $0x18] sm:$0xf]
  %v22 = vld [vmem:[%s0 + $0x1c] sm:$0xf]
  %v23 = vld [vmem:[%s1] sm:$0xf]
  %v24 = vld [vmem:[%s1 + $0x4] sm:$0xf]
  %v25 = vld [vmem:[%s1 + $0x8] sm:$0xf]
  %v26 = vld [vmem:[%s1 + $0xc] sm:$0xf]
  %v27 = vld [vmem:[%s2] sm:$0x1]
  %v29 = vperm.slane %v27, 0
  %v39 = vunpack.c.l.b16 %v15
  %v40 = vunpack.c.l.b16 %v16
  %v41 = vunpack.c.l.b16 %v17
  %v42 = vunpack.c.l.b16 %v18
  %v43 = vunpack.c.l.b16 %v19
  %v44 = vunpack.c.l.b16 %v20
  %v45 = vunpack.c.l.b16 %v21
  %v46 = vunpack.c.l.b16 %v22
  %v47 = vpack.c.b16 %v40, %v39
  %v48 = vpack.c.b16 %v42, %v41
  %v49 = vpack.c.b16 %v44, %v43
  %v50 = vpack.c.b16 %v46, %v45
  %v55 = vunpack.c.l.b16 %v23
  %v56 = vunpack.c.l.b16 %v24
  %v57 = vunpack.c.l.b16 %v25
  %v58 = vunpack.c.l.b16 %v26
  %v59 = vpack.c.b16 %v56, %v55
  %v60 = vpack.c.b16 %v58, %v57
  %vm63 = vcmask 261120
  %v65 = vsel %vm63, %v47, 0
  %v68 = vsel %vm63, %v48, 0
  %v71 = vsel %vm63, %v49, 0
  %v74 = vsel %vm63, %v50, 0
  %76 = vmatpush.bf16.msra.mxu0 0
  %77 = vmatpush.bf16.msra.mxu0 0
  %78 = vmatpush.bf16.msra.mxu0 0
  %79 = vmatpush.bf16.msra.mxu0 0
  %80 = vmatpush.bf16.msra.mxu0 0
  %81 = vmatpush.bf16.msra.mxu0 0
  %82 = vmatpush.bf16.msra.mxu0 %v60
  %83 = vmatpush.bf16.msra.mxu0 %v59
  %84 = vmatmul.bf16.gmra.mxu0 %v65
  %v85 = vpop.f32.mrf.mxu0
  %v86 = vadd.f32 %v29, %v85
  %v87 = vpop.f32.mrf.mxu0
  %v88 = vadd.f32 %v29, %v87
  %89 = vmatmul.bf16.gmra.mxu0 %v68
  %v90 = vpop.f32.mrf.mxu0
  %v91 = vadd.f32 %v29, %v90
  %v92 = vpop.f32.mrf.mxu0
  %v93 = vadd.f32 %v29, %v92
  %94 = vmatmul.bf16.gmra.mxu0 %v71
  %v95 = vpop.f32.mrf.mxu0
  %v96 = vadd.f32 %v29, %v95
  %v97 = vpop.f32.mrf.mxu0
  %v98 = vadd.f32 %v29, %v97
  %99 = vmatmul.bf16.gmra.mxu0 %v74
  %v100 = vpop.f32.mrf.mxu0
  %v101 = vadd.f32 %v29, %v100
  %v102 = vpop.f32.mrf.mxu0
  %v103 = vadd.f32 %v29, %v102
  %104 = vdwg.mxu0
  %vm105 = vcmask 785408
  %106 = vst.msk [vmem:[%s3] sm:$0xff] %vm105, %v86
  %107 = vst.msk [vmem:[%s3 + $0x8] sm:$0xff] %vm105, %v88
  %108 = vst.msk [vmem:[%s3 + $0x10] sm:$0xff] %vm105, %v91
  %109 = vst.msk [vmem:[%s3 + $0x18] sm:$0xff] %vm105, %v93
  %110 = vst.msk [vmem:[%s3 + $0x20] sm:$0xff] %vm105, %v96
  %111 = vst.msk [vmem:[%s3 + $0x28] sm:$0xff] %vm105, %v98
  %112 = vst.msk [vmem:[%s3 + $0x30] sm:$0xff] %vm105, %v101
  %113 = vst.msk [vmem:[%s3 + $0x38] sm:$0xff] %vm105, %v103
  // Predicated region
  $region14: #{sent_encoder_forward.2} parent=0 // pred_check
    _
  $region15: #{sent_encoder_forward.2} parent=0 // pred_check_branch
    %115 = sbr.rel (0) target = $region17
  $region16: #{sent_encoder_forward.2} parent=0 // pred_region
    _
  $region17: #{sent_encoder_forward.2} parent=0 // pred_fallthru
    _
  // Predicated region
  $region18: #{sent_encoder_forward.2} parent=0 // pred_check
    _
  $region19: #{sent_encoder_forward.2} parent=0 // pred_check_branch
    %117 = sbr.rel (0) target = $region21
  $region20: #{sent_encoder_forward.2} parent=0 // pred_region
    _
  $region21: #{sent_encoder_forward.2} parent=0 // pred_fallthru
    _

// kernel: sent_encoder_forward.3
$region0: #{sent_encoder_forward.3}
  #allocation0 [shape = 'u32[]', space=smem, size = 0x4, offset = 0x4, fixed_abs, tag = 'smem constant byte address 0x4 - core index']
  #allocation1 [shape = 'u32[72,128]{1,0:T(1,128)}', space=vmem, size = 0x9000, scoped, tag = 'internal scratch']
  %s0 = inlined_call_operand.vmem [shape: s32[8,1], index: 0, kind: input, shape index: {}]
  %s1 = inlined_call_operand.vmem [shape: f32[8,8,96], index: 1, kind: input, shape index: {}]
  %s2 = inlined_call_operand.vmem [shape: bf16[32,96], index: 2, kind: input, shape index: {}]
  %s3 = inlined_call_operand.vmem [shape: f32[1,96], index: 3, kind: input, shape index: {}]
  %s4 = inlined_call_operand.vmem [shape: f32[8,32], index: 4, kind: output, shape index: {}]
  %s5 = sld [smem:[#allocation0]]
  $region30: #{sent_encoder_forward.3} parent=0
    _
  %s7 = ssub.s32 1, %s5
  %s8 = scalar_select 0, %s7, %s5
  // Predicated region
  $region2: #{sent_encoder_forward.3} parent=0 // pred_check
    _
  $region3: #{sent_encoder_forward.3} parent=0 // pred_check_branch
    %10 = sbr.rel (0) target = $region5
  $region4: #{sent_encoder_forward.3} parent=0 // pred_region
    _
  $region5: #{sent_encoder_forward.3} parent=0 // pred_fallthru
    _
  // Predicated region
  $region6: #{sent_encoder_forward.3} parent=0 // pred_check
    _
  $region7: #{sent_encoder_forward.3} parent=0 // pred_check_branch
    %12 = sbr.rel (0) target = $region9
  $region8: #{sent_encoder_forward.3} parent=0 // pred_region
    _
  $region9: #{sent_encoder_forward.3} parent=0 // pred_fallthru
    _
  // Predicated region
  $region10: #{sent_encoder_forward.3} parent=0 // pred_check
    _
  $region11: #{sent_encoder_forward.3} parent=0 // pred_check_branch
    %14 = sbr.rel (0) target = $region13
  $region12: #{sent_encoder_forward.3} parent=0 // pred_region
    _
  $region13: #{sent_encoder_forward.3} parent=0 // pred_fallthru
    _
  // Predicated region
  $region14: #{sent_encoder_forward.3} parent=0 // pred_check
    _
  $region15: #{sent_encoder_forward.3} parent=0 // pred_check_branch
    %16 = sbr.rel (0) target = $region17
  $region16: #{sent_encoder_forward.3} parent=0 // pred_region
    _
  $region17: #{sent_encoder_forward.3} parent=0 // pred_fallthru
    _
  %p18 = scmp.eq.s32.totalorder 0, 0
  // Predicated region
  $region18: #{sent_encoder_forward.3} parent=0 // pred_check
    %p19 = pneg %p18
  $region19: #{sent_encoder_forward.3} parent=0 // pred_check_branch
    %21 = sbr.rel (%p19) target = $region21
  $region20: #{sent_encoder_forward.3} parent=0 // pred_region
    %vm22 = vcmask 261120
    %23 = vst.msk [vmem:[%s4] sm:$0xff] %vm22, 0.0
  $region21: #{sent_encoder_forward.3} parent=0 // pred_fallthru
    _
  %v24 = vld [vmem:[%s0] sm:$0xff]
  %v25 = vld [vmem:[%s2] sm:$0xf]
  %v26 = vld [vmem:[%s2 + $0x4] sm:$0xf]
  %v27 = vld [vmem:[%s2 + $0x8] sm:$0xf]
  %v28 = vld [vmem:[%s2 + $0xc] sm:$0xf]
  %v29 = vld [vmem:[%s3] sm:$0x1]
  %v30 = vld [vmem:[%s4] sm:$0xff]
  %s31 = smul.u32 0, 8
  %v32 = vpack.c.bf16 %v30, %v30
  %v34 = vperm.slane %v29, 0
  %v40 = vunpack.c.l.b16 %v25
  %v41 = vunpack.c.l.b16 %v26
  %v42 = vunpack.c.l.b16 %v27
  %v43 = vunpack.c.l.b16 %v28
  %v44 = vpack.c.b16 %v41, %v40
  %v45 = vpack.c.b16 %v43, %v42
  %vm48 = vcmask 261120
  %v50 = vsel %vm48, %v32, 0
  %52 = vmatpush.bf16.msra.mxu0 0
  %53 = vmatpush.bf16.msra.mxu0 0
  %54 = vmatpush.bf16.msra.mxu0 0
  %55 = vmatpush.bf16.msra.mxu0 0
  %56 = vmatpush.bf16.msra.mxu0 0
  %57 = vmatpush.bf16.msra.mxu0 0
  %58 = vmatpush.bf16.msra.mxu0 %v45
  %59 = vmatpush.bf16.msra.mxu0 %v44
  %60 = vmatmul.bf16.gmra.mxu0 %v50
  %v61 = vpop.f32.mrf.mxu0
  %v62 = vadd.f32 %v34, %v61
  %v63 = vpop.f32.mrf.mxu0
  %64 = vdwg.mxu0
  %v65 = vld [vmem:[%s1] sm:$0xff]
  %v66 = vadd.f32 %v65, %v62
  %v67 = vxor.u32 %v66, 2147483648
  %v68 = vmul.f32 %v67, 1.442695
  %v69 = vpow.pop %v68
  %v70 = vadd.f32 %v69, 1.0
  %v71 = vrcp.pop %v70
  %v72 = vmul.f32 %v70, %v71
  %v73 = vsub.f32 1.0, %v72
  %v74 = vmul.f32 %v71, %v73
  %v75 = vadd.f32 %v71, %v74
  %vm76 = vweird.f32 %v70
  %vm77 = vweird.f32 %v71
  %vm78 = vmor %vm76, %vm77
  %v79 = vsel %vm78, %v71, %v75
  %v80 = vand.u32 2147483647, %v70
  %vm81 = vcmp.eq.f32.partialorder %v80, 8.507059e+37
  %v82 = vand.u32 %v70, 2147483648
  %v83 = vor.u32 1.1754944e-38, %v82
  %v84 = vsel %vm81, %v83, %v79
  %v85 = vmul.f32 1.0, %v84
  %87 = vrot.lane.b32.xlu0 %v62, 64
  %v88 = vpop.permute.xlu0 %87
  %v90 = vmul.f32 %v85, %v88
  %92 = vrot.lane.b32.xlu0 %v90, 64
  %v93 = vpop.permute.xlu0 %92
  %v95 = vadd.f32 %v65, %v93
  %v96 = vtanh.pop %v95
  %v97 = vsub.f32 1.0, %v85
  %99 = vrot.lane.b32.xlu0 %v96, 96
  %v100 = vpop.permute.xlu0 %99
  %v102 = vmul.f32 %v97, %v100
  %104 = vrot.lane.b32.xlu0 %v30, 32
  %v105 = vpop.permute.xlu0 %104
  %v107 = vmul.f32 %v85, %v105
  %v108 = vadd.f32 %v102, %v107
  %v109 = vstv %s31
  %vm110 = vcmp.lt.s32.totalorder %v109, %v24
  %v111 = vsel %vm110, 1, 0
  %112 = vset.pattern.permute.xlu0 0
  %113 = vperm.xlu0 %112, %v111
  %v114 = vpop.permute.xlu0 %113
  %vm115 = vcmp.eq.s32.totalorder %v114, 1
  %v116 = vsel %vm115, %v108, %v105
  %s117 = sadd.s32 %s31, 1
  %v118 = vpack.c.bf16 %v116, %v116
  %120 = vrot.lane.b32.xlu0 %v118, 96
  %v121 = vpop.permute.xlu0 %120
  %v123 = vsel %vm48, %v121, 0
  %125 = vmatpush.bf16.msra.mxu0 0
  %126 = vmatpush.bf16.msra.mxu0 0
  %127 = vmatpush.bf16.msra.mxu0 0
  %128 = vmatpush.bf16.msra.mxu0 0
  %129 = vmatpush.bf16.msra.mxu0 0
  %130 = vmatpush.bf16.msra.mxu0 0
  %131 = vmatpush.bf16.msra.mxu0 %v45
  %132 = vmatpush.bf16.msra.mxu0 %v44
  %133 = vmatmul.bf16.gmra.mxu0 %v123
  %v134 = vpop.f32.mrf.mxu0
  %v135 = vadd.f32 %v34, %v134
  %v136 = vpop.f32.mrf.mxu0
  %137 = vdwg.mxu0
  %s138 = scalar_lea.vmem %s1, 8
  %v139 = vld [vmem:[%s138] sm:$0xff]
  %v140 = vadd.f32 %v139, %v135
  %v141 = vxor.u32 %v140, 2147483648
  %v142 = vmul.f32 %v141, 1.442695
  %v143 = vpow.pop %v142
  %v144 = vadd.f32 %v143, 1.0
  %v145 = vrcp.pop %v144
  %v146 = vmul.f32 %v144, %v145
  %v147 = vsub.f32 1.0, %v146
  %v148 = vmul.f32 %v145, %v147
  %v149 = vadd.f32 %v145, %v148
  %vm150 = vweird.f32 %v144
  %vm151 = vweird.f32 %v145
  %vm152 = vmor %vm150, %vm151
  %v153 = vsel %vm152, %v145, %v149
  %v154 = vand.u32 2147483647, %v144
  %vm155 = vcmp.eq.f32.partialorder %v154, 8.507059e+37
  %v156 = vand.u32 %v144, 2147483648
  %v157 = vor.u32 1.1754944e-38, %v156
  %v158 = vsel %vm155, %v157, %v153
  %v159 = vmul.f32 1.0, %v158
  %161 = vrot.lane.b32.xlu0 %v135, 64
  %v162 = vpop.permute.xlu0 %161
  %v164 = vmul.f32 %v159, %v162
  %166 = vrot.lane.b32.xlu0 %v164, 64
  %v167 = vpop.permute.xlu0 %166
  %v169 = vadd.f32 %v139, %v167
  %v170 = vtanh.pop %v169
  %v171 = vsub.f32 1.0, %v159
  %173 = vrot.lane.b32.xlu0 %v170, 96
  %v174 = vpop.permute.xlu0 %173
  %v176 = vmul.f32 %v171, %v174
  %v177 = vmul.f32 %v159, %v116
  %v178 = vadd.f32 %v176, %v177
  %v179 = vstv %s117
  %vm180 = vcmp.lt.s32.totalorder %v179, %v24
  %v181 = vsel %vm180, 1, 0
  %182 = vset.pattern.permute.xlu0 0
  %183 = vperm.xlu0 %182, %v181
  %v184 = vpop.permute.xlu0 %183
  %vm185 = vcmp.eq.s32.totalorder %v184, 1
  %v186 = vsel %vm185, %v178, %v116
  %s187 = sadd.s32 %s31, 2
  %v188 = vpack.c.bf16 %v186, %v186
  %190 = vrot.lane.b32.xlu0 %v188, 96
  %v191 = vpop.permute.xlu0 %190
  %v193 = vsel %vm48, %v191, 0
  %195 = vmatpush.bf16.msra.mxu0 0
  %196 = vmatpush.bf16.msra.mxu0 0
  %197 = vmatpush.bf16.msra.mxu0 0
  %198 = vmatpush.bf16.msra.mxu0 0
  %199 = vmatpush.bf16.msra.mxu0 0
  %200 = vmatpush.bf16.msra.mxu0 0
  %201 = vmatpush.bf16.msra.mxu0 %v45
  %202 = vmatpush.bf16.msra.mxu0 %v44
  %203 = vmatmul.bf16.gmra.mxu0 %v193
  %v204 = vpop.f32.mrf.mxu0
  %v205 = vadd.f32 %v34, %v204
  %v206 = vpop.f32.mrf.mxu0
  %207 = vdwg.mxu0
  %s208 = scalar_lea.vmem %s1, 16
  %v209 = vld [vmem:[%s208] sm:$0xff]
  %v210 = vadd.f32 %v209, %v205
  %v211 = vxor.u32 %v210, 2147483648
  %v212 = vmul.f32 %v211, 1.442695
  %v213 = vpow.pop %v212
  %v214 = vadd.f32 %v213, 1.0
  %v215 = vrcp.pop %v214
  %v216 = vmul.f32 %v214, %v215
  %v217 = vsub.f32 1.0, %v216
  %v218 = vmul.f32 %v215, %v217
  %v219 = vadd.f32 %v215, %v218
  %vm220 = vweird.f32 %v214
  %vm221 = vweird.f32 %v215
  %vm222 = vmor %vm220, %vm221
  %v223 = vsel %vm222, %v215, %v219
  %v224 = vand.u32 2147483647, %v214
  %vm225 = vcmp.eq.f32.partialorder %v224, 8.507059e+37
  %v226 = vand.u32 %v214, 2147483648
  %v227 = vor.u32 1.1754944e-38, %v226
  %v228 = vsel %vm225, %v227, %v223
  %v229 = vmul.f32 1.0, %v228
  %231 = vrot.lane.b32.xlu0 %v205, 64
  %v232 = vpop.permute.xlu0 %231
  %v234 = vmul.f32 %v229, %v232
  %236 = vrot.lane.b32.xlu0 %v234, 64
  %v237 = vpop.permute.xlu0 %236
  %v239 = vadd.f32 %v209, %v237
  %v240 = vtanh.pop %v239
  %v241 = vsub.f32 1.0, %v229
  %243 = vrot.lane.b32.xlu0 %v240, 96
  %v244 = vpop.permute.xlu0 %243
  %v246 = vmul.f32 %v241, %v244
  %v247 = vmul.f32 %v229, %v186
  %v248 = vadd.f32 %v246, %v247
  %v249 = vstv %s187
  %vm250 = vcmp.lt.s32.totalorder %v249, %v24
  %v251 = vsel %vm250, 1, 0
  %252 = vset.pattern.permute.xlu0 0
  %253 = vperm.xlu0 %252, %v251
  %v254 = vpop.permute.xlu0 %253
  %vm255 = vcmp.eq.s32.totalorder %v254, 1
  %v256 = vsel %vm255, %v248, %v186
  %s257 = sadd.s32 %s31, 3
  %v258 = vpack.c.bf16 %v256, %v256
  %260 = vrot.lane.b32.xlu0 %v258, 96
  %v261 = vpop.permute.xlu0 %260
  %v263 = vsel %vm48, %v261, 0
  %265 = vmatpush.bf16.msra.mxu0 0
  %266 = vmatpush.bf16.msra.mxu0 0
  %267 = vmatpush.bf16.msra.mxu0 0
  %268 = vmatpush.bf16.msra.mxu0 0
  %269 = vmatpush.bf16.msra.mxu0 0
  %270 = vmatpush.bf16.msra.mxu0 0
  %271 = vmatpush.bf16.msra.mxu0 %v45
  %272 = vmatpush.bf16.msra.mxu0 %v44
  %273 = vmatmul.bf16.gmra.mxu0 %v263
  %v274 = vpop.f32.mrf.mxu0
  %v275 = vadd.f32 %v34, %v274
  %v276 = vpop.f32.mrf.mxu0
  %277 = vdwg.mxu0
  %s278 = scalar_lea.vmem %s1, 24
  %v279 = vld [vmem:[%s278] sm:$0xff]
  %v280 = vadd.f32 %v279, %v275
  %v281 = vxor.u32 %v280, 2147483648
  %v282 = vmul.f32 %v281, 1.442695
  %v283 = vpow.pop %v282
  %v284 = vadd.f32 %v283, 1.0
  %v285 = vrcp.pop %v284
  %v286 = vmul.f32 %v284, %v285
  %v287 = vsub.f32 1.0, %v286
  %v288 = vmul.f32 %v285, %v287
  %v289 = vadd.f32 %v285, %v288
  %vm290 = vweird.f32 %v284
  %vm291 = vweird.f32 %v285
  %vm292 = vmor %vm290, %vm291
  %v293 = vsel %vm292, %v285, %v289
  %v294 = vand.u32 2147483647, %v284
  %vm295 = vcmp.eq.f32.partialorder %v294, 8.507059e+37
  %v296 = vand.u32 %v284, 2147483648
  %v297 = vor.u32 1.1754944e-38, %v296
  %v298 = vsel %vm295, %v297, %v293
  %v299 = vmul.f32 1.0, %v298
  %301 = vrot.lane.b32.xlu0 %v275, 64
  %v302 = vpop.permute.xlu0 %301
  %v304 = vmul.f32 %v299, %v302
  %306 = vrot.lane.b32.xlu0 %v304, 64
  %v307 = vpop.permute.xlu0 %306
  %v309 = vadd.f32 %v279, %v307
  %v310 = vtanh.pop %v309
  %v311 = vsub.f32 1.0, %v299
  %313 = vrot.lane.b32.xlu0 %v310, 96
  %v314 = vpop.permute.xlu0 %313
  %v316 = vmul.f32 %v311, %v314
  %v317 = vmul.f32 %v299, %v256
  %v318 = vadd.f32 %v316, %v317
  %v319 = vstv %s257
  %vm320 = vcmp.lt.s32.totalorder %v319, %v24
  %v321 = vsel %vm320, 1, 0
  %322 = vset.pattern.permute.xlu0 0
  %323 = vperm.xlu0 %322, %v321
  %v324 = vpop.permute.xlu0 %323
  %vm325 = vcmp.eq.s32.totalorder %v324, 1
  %v326 = vsel %vm325, %v318, %v256
  %s327 = sadd.s32 %s31, 4
  %v328 = vpack.c.bf16 %v326, %v326
  %330 = vrot.lane.b32.xlu0 %v328, 96
  %v331 = vpop.permute.xlu0 %330
  %v333 = vsel %vm48, %v331, 0
  %335 = vmatpush.bf16.msra.mxu0 0
  %336 = vmatpush.bf16.msra.mxu0 0
  %337 = vmatpush.bf16.msra.mxu0 0
  %338 = vmatpush.bf16.msra.mxu0 0
  %339 = vmatpush.bf16.msra.mxu0 0
  %340 = vmatpush.bf16.msra.mxu0 0
  %341 = vmatpush.bf16.msra.mxu0 %v45
  %342 = vmatpush.bf16.msra.mxu0 %v44
  %343 = vmatmul.bf16.gmra.mxu0 %v333
  %v344 = vpop.f32.mrf.mxu0
  %v345 = vadd.f32 %v34, %v344
  %v346 = vpop.f32.mrf.mxu0
  %347 = vdwg.mxu0
  %s348 = scalar_lea.vmem %s1, 32
  %v349 = vld [vmem:[%s348] sm:$0xff]
  %v350 = vadd.f32 %v349, %v345
  %v351 = vxor.u32 %v350, 2147483648
  %v352 = vmul.f32 %v351, 1.442695
  %v353 = vpow.pop %v352
  %v354 = vadd.f32 %v353, 1.0
  %v355 = vrcp.pop %v354
  %v356 = vmul.f32 %v354, %v355
  %v357 = vsub.f32 1.0, %v356
  %v358 = vmul.f32 %v355, %v357
  %v359 = vadd.f32 %v355, %v358
  %vm360 = vweird.f32 %v354
  %vm361 = vweird.f32 %v355
  %vm362 = vmor %vm360, %vm361
  %v363 = vsel %vm362, %v355, %v359
  %v364 = vand.u32 2147483647, %v354
  %vm365 = vcmp.eq.f32.partialorder %v364, 8.507059e+37
  %v366 = vand.u32 %v354, 2147483648
  %v367 = vor.u32 1.1754944e-38, %v366
  %v368 = vsel %vm365, %v367, %v363
  %v369 = vmul.f32 1.0, %v368
  %371 = vrot.lane.b32.xlu0 %v345, 64
  %v372 = vpop.permute.xlu0 %371
  %v374 = vmul.f32 %v369, %v372
  %376 = vrot.lane.b32.xlu0 %v374, 64
  %v377 = vpop.permute.xlu0 %376
  %v379 = vadd.f32 %v349, %v377
  %v380 = vtanh.pop %v379
  %v381 = vsub.f32 1.0, %v369
  %383 = vrot.lane.b32.xlu0 %v380, 96
  %v384 = vpop.permute.xlu0 %383
  %v386 = vmul.f32 %v381, %v384
  %v387 = vmul.f32 %v369, %v326
  %v388 = vadd.f32 %v386, %v387
  %v389 = vstv %s327
  %vm390 = vcmp.lt.s32.totalorder %v389, %v24
  %v391 = vsel %vm390, 1, 0
  %392 = vset.pattern.permute.xlu0 0
  %393 = vperm.xlu0 %392, %v391
  %v394 = vpop.permute.xlu0 %393
  %vm395 = vcmp.eq.s32.totalorder %v394, 1
  %v396 = vsel %vm395, %v388, %v326
  %s397 = sadd.s32 %s31, 5
  %v398 = vpack.c.bf16 %v396, %v396
  %400 = vrot.lane.b32.xlu0 %v398, 96
  %v401 = vpop.permute.xlu0 %400
  %v403 = vsel %vm48, %v401, 0
  %405 = vmatpush.bf16.msra.mxu0 0
  %406 = vmatpush.bf16.msra.mxu0 0
  %407 = vmatpush.bf16.msra.mxu0 0
  %408 = vmatpush.bf16.msra.mxu0 0
  %409 = vmatpush.bf16.msra.mxu0 0
  %410 = vmatpush.bf16.msra.mxu0 0
  %411 = vmatpush.bf16.msra.mxu0 %v45
  %412 = vmatpush.bf16.msra.mxu0 %v44
  %413 = vmatmul.bf16.gmra.mxu0 %v403
  %v414 = vpop.f32.mrf.mxu0
  %v415 = vadd.f32 %v34, %v414
  %v416 = vpop.f32.mrf.mxu0
  %417 = vdwg.mxu0
  %s418 = scalar_lea.vmem %s1, 40
  %v419 = vld [vmem:[%s418] sm:$0xff]
  %v420 = vadd.f32 %v419, %v415
  %v421 = vxor.u32 %v420, 2147483648
  %v422 = vmul.f32 %v421, 1.442695
  %v423 = vpow.pop %v422
  %v424 = vadd.f32 %v423, 1.0
  %v425 = vrcp.pop %v424
  %v426 = vmul.f32 %v424, %v425
  %v427 = vsub.f32 1.0, %v426
  %v428 = vmul.f32 %v425, %v427
  %v429 = vadd.f32 %v425, %v428
  %vm430 = vweird.f32 %v424
  %vm431 = vweird.f32 %v425
  %vm432 = vmor %vm430, %vm431
  %v433 = vsel %vm432, %v425, %v429
  %v434 = vand.u32 2147483647, %v424
  %vm435 = vcmp.eq.f32.partialorder %v434, 8.507059e+37
  %v436 = vand.u32 %v424, 2147483648
  %v437 = vor.u32 1.1754944e-38, %v436
  %v438 = vsel %vm435, %v437, %v433
  %v439 = vmul.f32 1.0, %v438
  %441 = vrot.lane.b32.xlu0 %v415, 64
  %v442 = vpop.permute.xlu0 %441
  %v444 = vmul.f32 %v439, %v442
  %446 = vrot.lane.b32.xlu0 %v444, 64
  %v447 = vpop.permute.xlu0 %446
  %v449 = vadd.f32 %v419, %v447
  %v450 = vtanh.pop %v449
  %v451 = vsub.f32 1.0, %v439
  %453 = vrot.lane.b32.xlu0 %v450, 96
  %v454 = vpop.permute.xlu0 %453
  %v456 = vmul.f32 %v451, %v454
  %v457 = vmul.f32 %v439, %v396
  %v458 = vadd.f32 %v456, %v457
  %v459 = vstv %s397
  %vm460 = vcmp.lt.s32.totalorder %v459, %v24
  %v461 = vsel %vm460, 1, 0
  %462 = vset.pattern.permute.xlu0 0
  %463 = vperm.xlu0 %462, %v461
  %v464 = vpop.permute.xlu0 %463
  %vm465 = vcmp.eq.s32.totalorder %v464, 1
  %v466 = vsel %vm465, %v458, %v396
  %s467 = sadd.s32 %s31, 6
  %v468 = vpack.c.bf16 %v466, %v466
  %470 = vrot.lane.b32.xlu0 %v468, 96
  %v471 = vpop.permute.xlu0 %470
  %v473 = vsel %vm48, %v471, 0
  %475 = vmatpush.bf16.msra.mxu0 0
  %476 = vmatpush.bf16.msra.mxu0 0
  %477 = vmatpush.bf16.msra.mxu0 0
  %478 = vmatpush.bf16.msra.mxu0 0
  %479 = vmatpush.bf16.msra.mxu0 0
  %480 = vmatpush.bf16.msra.mxu0 0
  %481 = vmatpush.bf16.msra.mxu0 %v45
  %482 = vmatpush.bf16.msra.mxu0 %v44
  %483 = vmatmul.bf16.gmra.mxu0 %v473
  %v484 = vpop.f32.mrf.mxu0
  %v485 = vadd.f32 %v34, %v484
  %v486 = vpop.f32.mrf.mxu0
  %487 = vdwg.mxu0
  %s488 = scalar_lea.vmem %s1, 48
  %v489 = vld [vmem:[%s488] sm:$0xff]
  %v490 = vadd.f32 %v489, %v485
  %v491 = vxor.u32 %v490, 2147483648
  %v492 = vmul.f32 %v491, 1.442695
  %v493 = vpow.pop %v492
  %v494 = vadd.f32 %v493, 1.0
  %v495 = vrcp.pop %v494
  %v496 = vmul.f32 %v494, %v495
  %v497 = vsub.f32 1.0, %v496
  %v498 = vmul.f32 %v495, %v497
  %v499 = vadd.f32 %v495, %v498
  %vm500 = vweird.f32 %v494
  %vm501 = vweird.f32 %v495
  %vm502 = vmor %vm500, %vm501
  %v503 = vsel %vm502, %v495, %v499
  %v504 = vand.u32 2147483647, %v494
  %vm505 = vcmp.eq.f32.partialorder %v504, 8.507059e+37
  %v506 = vand.u32 %v494, 2147483648
  %v507 = vor.u32 1.1754944e-38, %v506
  %v508 = vsel %vm505, %v507, %v503
  %v509 = vmul.f32 1.0, %v508
  %511 = vrot.lane.b32.xlu0 %v485, 64
  %v512 = vpop.permute.xlu0 %511
  %v514 = vmul.f32 %v509, %v512
  %516 = vrot.lane.b32.xlu0 %v514, 64
  %v517 = vpop.permute.xlu0 %516
  %v519 = vadd.f32 %v489, %v517
  %v520 = vtanh.pop %v519
  %v521 = vsub.f32 1.0, %v509
  %523 = vrot.lane.b32.xlu0 %v520, 96
  %v524 = vpop.permute.xlu0 %523
  %v526 = vmul.f32 %v521, %v524
  %v527 = vmul.f32 %v509, %v466
  %v528 = vadd.f32 %v526, %v527
  %v529 = vstv %s467
  %vm530 = vcmp.lt.s32.totalorder %v529, %v24
  %v531 = vsel %vm530, 1, 0
  %532 = vset.pattern.permute.xlu0 0
  %533 = vperm.xlu0 %532, %v531
  %v534 = vpop.permute.xlu0 %533
  %vm535 = vcmp.eq.s32.totalorder %v534, 1
  %v536 = vsel %vm535, %v528, %v466
  %s537 = sadd.s32 %s31, 7
  %v538 = vpack.c.bf16 %v536, %v536
  %540 = vrot.lane.b32.xlu0 %v538, 96
  %v541 = vpop.permute.xlu0 %540
  %v543 = vsel %vm48, %v541, 0
  %545 = vmatpush.bf16.msra.mxu0 0
  %546 = vmatpush.bf16.msra.mxu0 0
  %547 = vmatpush.bf16.msra.mxu0 0
  %548 = vmatpush.bf16.msra.mxu0 0
  %549 = vmatpush.bf16.msra.mxu0 0
  %550 = vmatpush.bf16.msra.mxu0 0
  %551 = vmatpush.bf16.msra.mxu0 %v45
  %552 = vmatpush.bf16.msra.mxu0 %v44
  %553 = vmatmul.bf16.gmra.mxu0 %v543
  %v554 = vpop.f32.mrf.mxu0
  %v555 = vadd.f32 %v34, %v554
  %v556 = vpop.f32.mrf.mxu0
  %557 = vdwg.mxu0
  %s558 = scalar_lea.vmem %s1, 56
  %v559 = vld [vmem:[%s558] sm:$0xff]
  %v560 = vadd.f32 %v559, %v555
  %v561 = vxor.u32 %v560, 2147483648
  %v562 = vmul.f32 %v561, 1.442695
  %v563 = vpow.pop %v562
  %v564 = vadd.f32 %v563, 1.0
  %v565 = vrcp.pop %v564
  %v566 = vmul.f32 %v564, %v565
  %v567 = vsub.f32 1.0, %v566
  %v568 = vmul.f32 %v565, %v567
  %v569 = vadd.f32 %v565, %v568
  %vm570 = vweird.f32 %v564
  %vm571 = vweird.f32 %v565
  %vm572 = vmor %vm570, %vm571
  %v573 = vsel %vm572, %v565, %v569
  %v574 = vand.u32 2147483647, %v564
  %vm575 = vcmp.eq.f32.partialorder %v574, 8.507059e+37
  %v576 = vand.u32 %v564, 2147483648
  %v577 = vor.u32 1.1754944e-38, %v576
  %v578 = vsel %vm575, %v577, %v573
  %v579 = vmul.f32 1.0, %v578
  %581 = vrot.lane.b32.xlu0 %v555, 64
  %v582 = vpop.permute.xlu0 %581
  %v584 = vmul.f32 %v579, %v582
  %586 = vrot.lane.b32.xlu0 %v584, 64
  %v587 = vpop.permute.xlu0 %586
  %v589 = vadd.f32 %v559, %v587
  %v590 = vtanh.pop %v589
  %v591 = vsub.f32 1.0, %v579
  %593 = vrot.lane.b32.xlu0 %v590, 96
  %v594 = vpop.permute.xlu0 %593
  %v596 = vmul.f32 %v591, %v594
  %v597 = vmul.f32 %v579, %v536
  %v598 = vadd.f32 %v596, %v597
  %v599 = vstv %s537
  %vm600 = vcmp.lt.s32.totalorder %v599, %v24
  %v601 = vsel %vm600, 1, 0
  %602 = vset.pattern.permute.xlu0 0
  %603 = vperm.xlu0 %602, %v601
  %v604 = vpop.permute.xlu0 %603
  %vm605 = vcmp.eq.s32.totalorder %v604, 1
  %v606 = vsel %vm605, %v598, %v536
  %608 = vrot.lane.b32.xlu0 %v606, 96
  %v609 = vpop.permute.xlu0 %608
  %611 = vst.msk [vmem:[%s4] sm:$0xff] %vm48, %v609
  // Predicated region
  $region22: #{sent_encoder_forward.3} parent=0 // pred_check
    _
  $region23: #{sent_encoder_forward.3} parent=0 // pred_check_branch
    %613 = sbr.rel (0) target = $region25
  $region24: #{sent_encoder_forward.3} parent=0 // pred_region
    _
  $region25: #{sent_encoder_forward.3} parent=0 // pred_fallthru
    _
  // Predicated region
  $region26: #{sent_encoder_forward.3} parent=0 // pred_check
    _
  $region27: #{sent_encoder_forward.3} parent=0 // pred_check_branch
    %615 = sbr.rel (0) target = $region29
  $region28: #{sent_encoder_forward.3} parent=0 // pred_region
    _
  $region29: #{sent_encoder_forward.3} parent=0 // pred_fallthru
    _

</llo_original>
